<compile_context>
chip_gen: v7x
topology: tpu7x:2x2x1
jax: 0.10.0
libtpu: 0.0.40
codegen_flags: <defaults>
</compile_context>

<pallas_src>
import functools
import math

import jax
import jax.numpy as jnp
from jax.experimental import pallas as pl
from jax.experimental.pallas import tpu as pltpu

MM_DTYPE = jnp.bfloat16                    # matmul-operand dtype (f32 MXU accumulation)
_DECODER_VMEM_LIMIT = 48 * 1024 * 1024     # < v7x 64 MiB physical; > v5e 16 MiB scoped default


# ---------------------------------------------------------------------------
# small helpers
# ---------------------------------------------------------------------------
def _pick_tile(n, cap=512):
    """Largest power-of-two tile (cap..128) dividing n with >= 2 tiles, else n."""
    t = cap
    while t >= 128:
        if n % t == 0 and n // t >= 2:
            return t
        t //= 2
    return n


def _const_spec(a, grid_rank):
    """Full-array BlockSpec with a constant index map, single-buffered (weights)."""
    nd = a.ndim
    if grid_rank == 1:
        index_map = lambda b, _nd=nd: (0,) * _nd
    else:
        index_map = lambda b, n, _nd=nd: (0,) * _nd
    return pl.BlockSpec(a.shape, index_map,
                        pipeline_mode=pl.Buffered(buffer_count=1))


def _mm(a, b):
    """a @ b with bf16 operands, f32 accumulation (MXU-friendly)."""
    return jnp.dot(a.astype(MM_DTYPE), b.astype(MM_DTYPE),
                   preferred_element_type=jnp.float32)


def _bmm(a, b, dims):
    """Batched matmul (leading batch dim), bf16 operands, f32 accumulation."""
    return jax.lax.dot_general(a.astype(MM_DTYPE), b.astype(MM_DTYPE),
                               dimension_numbers=dims,
                               preferred_element_type=jnp.float32)


# ---------------------------------------------------------------------------
# 1) Encoder: shared per-point MLP (channel-major) + global max-pool -> latent
# TODO(synk): PointNet2Encoder definition is not provided; the set-abstraction
# stages (FPS + ball-query grouping) are replaced by a shared per-point MLP with
# a global max-pool, and l1_xyz is a strided subsample of l0_xyz.
# ---------------------------------------------------------------------------
def _encoder_kernel(x_ref, w1, b1, w2, b2, w3, b3, o_ref):
    x = x_ref[0]                                                   # (Cin, N): N on lanes
    h = jnp.maximum(_mm(w1[...], x) + b1[...], 0.0)                # (32, N)
    h = jnp.maximum(_mm(w2[...], h) + b2[...], 0.0)                # (64, N)
    h = _mm(w3[...], h) + b3[...]                                  # (L, N)
    o_ref[0] = jnp.max(h, axis=1, keepdims=True)                   # (L, 1) global max-pool


def pointnet_encode(x_bcn, enc):
    """x_bcn: (B, Cin, N) channel-major. Returns latent (B, L)."""
    B, Cin, N = x_bcn.shape
    L = enc["w3"].shape[0]
    weights = [enc["w1"], enc["b1"], enc["w2"], enc["b2"], enc["w3"], enc["b3"]]
    latent = pl.pallas_call(
        _encoder_kernel,
        out_shape=jax.ShapeDtypeStruct((B, L, 1), jnp.float32),
        grid=(B,),                       # whole N per step: the (Cin, N) tile is tiny, so
        in_specs=[pl.BlockSpec((1, Cin, N), lambda b: (b, 0, 0))]   # per-step overhead would
                 + [_const_spec(w, 1) for w in weights],            # dominate finer tiling
        out_specs=pl.BlockSpec((1, L, 1), lambda b: (b, 0, 0)),
        compiler_params=pltpu.CompilerParams(dimension_semantics=("parallel",)),
    )(x_bcn, *weights)
    return latent[:, :, 0]                                         # (B, L)


# ---------------------------------------------------------------------------
# 2) Decoder: ALL Transformer layers fused into one pallas_call; channel-major
#    activations (C, S) with S on lanes; head-batched attention.
# TODO(synk): Transformer(config)/BertConfig definitions are not provided; each
# layer is Linear(in->hidden) + one MHSA+FFN block (post-LN, BERT-style) +
# Linear(hidden->out); dropout omitted (inference).
# TODO(synk): the many tiny per-layer bias/LN params could be packed into one
# stacked array to cut DMA-descriptor and VMEM-padding overhead.
# ---------------------------------------------------------------------------
_T_PARAM_ORDER = ("w_in", "b_in", "wqkv", "bqkv", "wo", "bo", "ln1_g", "ln1_b",
                  "wf1", "bf1", "wf2", "bf2", "ln2_g", "ln2_b", "w_out", "b_out")


def _layernorm_cm(x, g, b, eps=1e-12):
    """LayerNorm over the channel axis (axis 0) of a channel-major (C, S) tile."""
    mu = jnp.mean(x, axis=0, keepdims=True)
    var = jnp.mean((x - mu) ** 2, axis=0, keepdims=True)
    return (x - mu) * jax.lax.rsqrt(var + eps) * g + b


def _gelu(x):
    # TODO(synk): tanh-approx GELU; HF BERT default is the exact erf GELU.
    return 0.5 * x * (1.0 + jnp.tanh(0.7978845608028654 * (x + 0.044715 * x * x * x)))


def _decoder_kernel(q_ref, *refs, num_heads, num_layers):
    o_ref = refs[-1]
    wrefs = refs[:-1]
    x = q_ref[0]                                                   # (Din0, S), S on lanes
    for li in range(num_layers):                                   # static unroll over layers
        (w_in, b_in, wqkv, bqkv, wo, bo, g1, be1, wf1, bf1, wf2, bf2,
         g2, be2, w_out, b_out) = [r[...] for r in wrefs[16 * li:16 * (li + 1)]]

        h = _mm(w_in, x) + b_in                                    # (H, S)
        H, S = h.shape
        hd = H // num_heads
        scale = 1.0 / math.sqrt(hd)

        # Fused QKV projection; the per-head split is a pure sublane-major reshape
        # (hd is a multiple of the sublane tile), so no per-head lane slicing.
        qkv = (_mm(wqkv, h) + bqkv).astype(MM_DTYPE)               # (3H, S)
        qkv = qkv.reshape(3, num_heads, hd, S)                     # (3, nh, hd, S)
        q_cm, k_cm, v_cm = qkv[0], qkv[1], qkv[2]                  # (nh, hd, S)
        q_rm = jnp.transpose(q_cm, (0, 2, 1))                      # (nh, S, hd)

        # Head-batched attention: one dot_general for QK^T and one for PV.
        s = _bmm(q_rm, k_cm, (((2,), (1,)), ((0,), (0,)))) * scale    # (nh, S, S) f32
        s = s - jnp.max(s, axis=-1, keepdims=True)
        p = jnp.exp(s.astype(MM_DTYPE))                            # bf16 exp (v6e/v7x EUP)
        denom = jnp.sum(p.astype(jnp.float32), axis=-1, keepdims=True)
        p = p * pl.reciprocal(denom, approx=True).astype(MM_DTYPE)
        pv = _bmm(v_cm, p, (((2,), (2,)), ((0,), (0,))))           # (nh, hd, S)

        ctx = pv.reshape(H, S)                                     # head merge (free reshape)
        attn = _mm(wo, ctx) + bo                                   # single K=H output proj
        h = _layernorm_cm(h + attn, g1, be1)

        ff = _gelu(_mm(wf1, h) + bf1)                              # (4H, S)
        ff = _mm(wf2, ff) + bf2                                    # (H, S)
        h = _layernorm_cm(h + ff, g2, be2)

        if li + 1 < num_layers:
            x = _mm(w_out, h) + b_out                              # (Dout, S)
        else:
            o_ref[0] = _mm(w_out, h) + b_out                       # (1, S) lane-dense


def decoder_forward(queries_cm, layers):
    """queries_cm: (B, Din0, S) channel-major. Returns decoder output (B, 1, S)."""
    B, Din, S = queries_cm.shape
    num_layers = len(layers)
    num_heads = layers[0]["num_heads"]
    weights = []
    for lp in layers:
        weights += [lp[name] for name in _T_PARAM_ORDER]
    kernel = functools.partial(_decoder_kernel, num_heads=num_heads,
                               num_layers=num_layers)
    # TODO(synk): if B == 1 on v7x (2 TensorCores), add a core-parallel split
    # (e.g. over heads) instead of grid=(B,), or accept one idle core here.
    return pl.pallas_call(
        kernel,
        out_shape=jax.ShapeDtypeStruct((B, 1, S), jnp.float32),
        grid=(B,),
        in_specs=[pl.BlockSpec((1, Din, S), lambda b: (b, 0, 0))]
                 + [_const_spec(w, 1) for w in weights],
        out_specs=pl.BlockSpec((1, 1, S), lambda b: (b, 0, 0)),
        compiler_params=pltpu.CompilerParams(
            dimension_semantics=("parallel",),
            vmem_limit_bytes=_DECODER_VMEM_LIMIT),
    )(queries_cm, *weights)


# ---------------------------------------------------------------------------
# 3) feature_upsample (3-NN inverse-distance interpolation) + tanh + rescale.
#    xyz2 arrives channel-major (3, S); the 3-NN gather is one MXU matmul
#    against a top-3 inverse-distance weight matrix; the normalizer is
#    accumulated on the fly; lane-dense (B, 1, N) output tiled over N.
# ---------------------------------------------------------------------------
def _upsample_kernel(x1_ref, x2_ref, p2_ref, o_ref):
    x1 = x1_ref[0]                                                 # (3, tN) channel-major
    x2t = jnp.transpose(x2_ref[0])                                 # (S, 3), tiny transpose
    p2 = p2_ref[0]                                                 # (1, S)

    n1 = jnp.sum(x1 * x1, axis=0, keepdims=True)                   # (1, tN)
    n2 = jnp.sum(x2t * x2t, axis=1, keepdims=True)                 # (S, 1)
    cross = jnp.dot(x2t, x1, preferred_element_type=jnp.float32)   # (S, tN)
    d = n2 + n1 - 2.0 * cross                                      # d[j, i] = |x2_j - x1_i|^2
    S, tN = d.shape
    row = jax.lax.broadcasted_iota(jnp.int32, (S, tN), 0)

    wmat = jnp.zeros((S, tN), jnp.float32)
    norm = jnp.zeros((1, tN), jnp.float32)
    # 3 nearest neighbours via iterative min-extraction (ties -> lowest index,
    # matching torch.sort stability); builds an inverse-distance weight matrix
    # and accumulates its column sums on the fly (exactly one row is selected
    # per column per iteration), avoiding an extra (S, tN) reduction.
    for _ in range(3):
        mval = jnp.min(d, axis=0, keepdims=True)                             # (1, tN)
        midx = jnp.min(jnp.where(d == mval, row, S), axis=0, keepdims=True)  # (1, tN)
        sel = row == midx                                                    # (S, tN)
        w = pl.reciprocal(jnp.maximum(mval, 0.0) + 1e-8, approx=True)        # clamp fp-neg
        wmat = wmat + jnp.where(sel, w, 0.0)
        norm = norm + w
        d = jnp.where(sel, jnp.inf, d)

    acc = jnp.dot(p2, wmat, preferred_element_type=jnp.float32)    # (1, tN) MXU gather
    interp = acc * pl.reciprocal(norm, approx=True)
    o_ref[0] = (jnp.tanh(interp) + 1.0) * 0.5                      # lane-dense (1, tN)


def feature_upsample_tanh(xyz1_bcn, xyz2_bcs, p2_b1s):
    """xyz1: (B, 3, N), xyz2: (B, 3, S), points2: (B, 1, S) -> (B, N)."""
    B, C, N = xyz1_bcn.shape
    S = xyz2_bcs.shape[2]
    # TODO(synk): tN could go to 1024/2048 on v5e/v6e (128 MiB VMEM); 512 is the
    # generation-safe choice for v7x's smaller VMEM.
    tN = _pick_tile(N)
    assert N % tN == 0
    out = pl.pallas_call(
        _upsample_kernel,
        out_shape=jax.ShapeDtypeStruct((B, 1, N), jnp.float32),
        grid=(B, N // tN),
        in_specs=[pl.BlockSpec((1, C, tN), lambda b, n: (b, 0, n)),
                  pl.BlockSpec((1, C, S), lambda b, n: (b, 0, 0)),
                  pl.BlockSpec((1, 1, S), lambda b, n: (b, 0, 0))],
        out_specs=pl.BlockSpec((1, 1, tN), lambda b, n: (b, 0, n)),
        compiler_params=pltpu.CompilerParams(
            dimension_semantics=("parallel", "parallel")),
    )(xyz1_bcn, xyz2_bcs, p2_b1s)
    return out[:, 0, :]                                            # (B, N)


# ---------------------------------------------------------------------------
# Parameter init (deterministic, synthetic, channel-major everywhere)
# ---------------------------------------------------------------------------
def _cm_linear(key, din, dout, scale=0.02, wdtype=MM_DTYPE):
    """Channel-major linear: weight (dout, din) bf16, bias (dout, 1) f32."""
    w = (scale * jax.random.normal(key, (dout, din), jnp.float32)).astype(wdtype)
    b = jnp.zeros((dout, 1), jnp.float32)
    return w, b


def init_params(key, in_chan, latent_dim, input_dims, hidden_dims, num_heads):
    keys = iter(jax.random.split(key, 64))
    enc = {}
    enc["w1"], enc["b1"] = _cm_linear(next(keys), in_chan, 32)
    enc["w2"], enc["b2"] = _cm_linear(next(keys), 32, 64)
    enc["w3"], enc["b3"] = _cm_linear(next(keys), 64, latent_dim)

    # transformer_create: output_dims = input_dims[1:] + [1]
    output_dims = list(input_dims[1:]) + [1]
    layers = []
    for i in range(len(output_dims)):
        din, h, dout = input_dims[i], hidden_dims[i], output_dims[i]
        assert h % num_heads == 0
        lp = {"num_heads": num_heads}
        lp["w_in"], lp["b_in"] = _cm_linear(next(keys), din, h)
        lp["wqkv"], lp["bqkv"] = _cm_linear(next(keys), h, 3 * h)   # fused QKV
        lp["wo"], lp["bo"] = _cm_linear(next(keys), h, h)
        lp["ln1_g"] = jnp.ones((h, 1), jnp.float32)
        lp["ln1_b"] = jnp.zeros((h, 1), jnp.float32)
        lp["wf1"], lp["bf1"] = _cm_linear(next(keys), h, 4 * h)     # intermediate = 4*hidden
        lp["wf2"], lp["bf2"] = _cm_linear(next(keys), 4 * h, h)
        lp["ln2_g"] = jnp.ones((h, 1), jnp.float32)
        lp["ln2_b"] = jnp.zeros((h, 1), jnp.float32)
        lp["w_out"], lp["b_out"] = _cm_linear(next(keys), h, dout)  # final layer: (1, h)
        layers.append(lp)
    return {"encoder": enc, "decoder": layers}


# ---------------------------------------------------------------------------
# Forward (mirrors AeTransformer.forward)
# ---------------------------------------------------------------------------
def ae_transformer_forward(xyz, feature, params, num_queries):
    """xyz: (B, D, N); feature: (B, 1, N)  -- PyTorch NCW layout in / (B, N) out."""
    B, D, N = xyz.shape
    S = num_queries                                                # real model hard-codes 512
    assert N >= S, "need at least num_queries points"

    xyz_f = jnp.concatenate([xyz, feature], axis=1)                # (B, D+1, N), stays NCW

    # ---- encoder ----
    latent = pointnet_encode(xyz_f, params["encoder"])             # (B, L)
    l0_xyz = xyz_f[:, :3, :]                                       # (B, 3, N) channel-major
    # TODO(synk): strided subsample stands in for FPS; exact only when N % S == 0.
    stride = N // S
    l1_xyz = l0_xyz[:, :, ::stride][:, :, :S]                      # (B, 3, S)

    # ---- queries (channel-major): cat([l1_xyz, latent.expand], dim=1) ----
    L = latent.shape[-1]
    latent_cm = jnp.broadcast_to(latent[:, :, None], (B, L, S))
    queries_cm = jnp.concatenate([l1_xyz, latent_cm], axis=1)      # (B, 3+L, S)

    # ---- decoder: all Transformer layers in one fused kernel ----
    p2 = decoder_forward(queries_cm, params["decoder"])            # (B, 1, S) lane-dense

    # ---- feature_upsample + tanh + (x+1)/2 + squeeze ----
    return feature_upsample_tanh(l0_xyz, l1_xyz, p2)               # (B, N)


if __name__ == "__main__":
    B, N, S = 2, 256, 64           # small shapes (real model: N=2048, S=512)
    IN_CHAN = 4                    # xyz(3) + feature(1)
    LATENT = 64                    # real model: latent_dim=512
    INPUT_DIMS = [3 + LATENT, 32]  # t_args.input_dims
    HIDDEN_DIMS = [32, 32]         # t_args.hidden_dims
    NUM_HEADS = 2                  # t_args.num_attention_heads

    key = jax.random.PRNGKey(0)
    kx, kf = jax.random.split(key)
    xyz = jax.random.normal(kx, (B, 3, N), jnp.float32)
    feature = jax.random.normal(kf, (B, 1, N), jnp.float32)

    params = init_params(jax.random.PRNGKey(1), IN_CHAN, LATENT,
                         INPUT_DIMS, HIDDEN_DIMS, NUM_HEADS)

    out = ae_transformer_forward(xyz, feature, params, num_queries=S)
    out = jax.block_until_ready(out)
    assert out.shape == (B, N), out.shape
    assert bool(jnp.all(jnp.isfinite(out)))
    print("KERNEL_OK")
</pallas_src>

<mosaic_0001>
module attributes {stable_mosaic.version = 11 : i64} {
  func.func @_encoder_kernel(%arg0: i32, %arg1: memref<1x4x256xf32, #tpu.memory_space<vmem>>, %arg2: memref<32x4xbf16, #tpu.memory_space<vmem>>, %arg3: memref<32x1xf32, #tpu.memory_space<vmem>>, %arg4: memref<64x32xbf16, #tpu.memory_space<vmem>>, %arg5: memref<64x1xf32, #tpu.memory_space<vmem>>, %arg6: memref<64x64xbf16, #tpu.memory_space<vmem>>, %arg7: memref<64x1xf32, #tpu.memory_space<vmem>>, %arg8: memref<1x64x1xf32, #tpu.memory_space<vmem>>) attributes {dimension_semantics = [#tpu.dimension_semantics<parallel>], iteration_bounds = array<i64: 2>, scalar_prefetch = 0 : i64, scratch_operands = 0 : i64, tpu.core_type = #tpu.core_type<tc>, window_params = [{transform_indices = @transform_0, window_bounds = array<i64: 1, 4, 256>}, {pipeline_mode = #tpu.pipeline_mode<synchronous>, transform_indices = @transform_1, window_bounds = array<i64: 32, 4>}, {pipeline_mode = #tpu.pipeline_mode<synchronous>, transform_indices = @transform_2, window_bounds = array<i64: 32, 1>}, {pipeline_mode = #tpu.pipeline_mode<synchronous>, transform_indices = @transform_3, window_bounds = array<i64: 64, 32>}, {pipeline_mode = #tpu.pipeline_mode<synchronous>, transform_indices = @transform_4, window_bounds = array<i64: 64, 1>}, {pipeline_mode = #tpu.pipeline_mode<synchronous>, transform_indices = @transform_5, window_bounds = array<i64: 64, 64>}, {pipeline_mode = #tpu.pipeline_mode<synchronous>, transform_indices = @transform_6, window_bounds = array<i64: 64, 1>}, {transform_indices = @transform_7, window_bounds = array<i64: 1, 64, 1>}]} {
    %c0 = arith.constant 0 : index
    %c0_0 = arith.constant 0 : index
    %c0_1 = arith.constant 0 : index
    %0 = vector.load %arg1[%c0, %c0_0, %c0_1] : memref<1x4x256xf32, #tpu.memory_space<vmem>>, vector<1x4x256xf32>
    %1 = vector.shape_cast %0 : vector<1x4x256xf32> to vector<4x256xf32>
    %c0_2 = arith.constant 0 : index
    %c0_3 = arith.constant 0 : index
    %2 = vector.load %arg2[%c0_2, %c0_3] : memref<32x4xbf16, #tpu.memory_space<vmem>>, vector<32x4xbf16>
    %3 = arith.truncf %1 : vector<4x256xf32> to vector<4x256xbf16>
    %cst = arith.constant dense<0.000000e+00> : vector<32x256xf32>
    %4 = tpu.matmul %2, %3, %cst {dimension_numbers = #tpu.dot_dimension_numbers<[1], [0], [0], [1], [0, 0, 1, 1], [], []>} : vector<32x4xbf16>, vector<4x256xbf16>, vector<32x256xf32> -> vector<32x256xf32>
    %c0_4 = arith.constant 0 : index
    %c0_5 = arith.constant 0 : index
    %5 = vector.load %arg3[%c0_4, %c0_5] : memref<32x1xf32, #tpu.memory_space<vmem>>, vector<32x1xf32>
    %6 = vector.broadcast %5 : vector<32x1xf32> to vector<32x256xf32>
    %7 = arith.addf %4, %6 : vector<32x256xf32>
    %cst_6 = arith.constant 0.000000e+00 : f32
    %8 = vector.broadcast %cst_6 : f32 to vector<32x256xf32>
    %9 = arith.maximumf %7, %8 : vector<32x256xf32>
    %c0_7 = arith.constant 0 : index
    %c0_8 = arith.constant 0 : index
    %10 = vector.load %arg4[%c0_7, %c0_8] : memref<64x32xbf16, #tpu.memory_space<vmem>>, vector<64x32xbf16>
    %11 = arith.truncf %9 : vector<32x256xf32> to vector<32x256xbf16>
    %cst_9 = arith.constant dense<0.000000e+00> : vector<64x256xf32>
    %12 = tpu.matmul %10, %11, %cst_9 {dimension_numbers = #tpu.dot_dimension_numbers<[1], [0], [0], [1], [0, 0, 1, 1], [], []>} : vector<64x32xbf16>, vector<32x256xbf16>, vector<64x256xf32> -> vector<64x256xf32>
    %c0_10 = arith.constant 0 : index
    %c0_11 = arith.constant 0 : index
    %13 = vector.load %arg5[%c0_10, %c0_11] : memref<64x1xf32, #tpu.memory_space<vmem>>, vector<64x1xf32>
    %14 = vector.broadcast %13 : vector<64x1xf32> to vector<64x256xf32>
    %15 = arith.addf %12, %14 : vector<64x256xf32>
    %cst_12 = arith.constant 0.000000e+00 : f32
    %16 = vector.broadcast %cst_12 : f32 to vector<64x256xf32>
    %17 = arith.maximumf %15, %16 : vector<64x256xf32>
    %c0_13 = arith.constant 0 : index
    %c0_14 = arith.constant 0 : index
    %18 = vector.load %arg6[%c0_13, %c0_14] : memref<64x64xbf16, #tpu.memory_space<vmem>>, vector<64x64xbf16>
    %19 = arith.truncf %17 : vector<64x256xf32> to vector<64x256xbf16>
    %cst_15 = arith.constant dense<0.000000e+00> : vector<64x256xf32>
    %20 = tpu.matmul %18, %19, %cst_15 {dimension_numbers = #tpu.dot_dimension_numbers<[1], [0], [0], [1], [0, 0, 1, 1], [], []>} : vector<64x64xbf16>, vector<64x256xbf16>, vector<64x256xf32> -> vector<64x256xf32>
    %c0_16 = arith.constant 0 : index
    %c0_17 = arith.constant 0 : index
    %21 = vector.load %arg7[%c0_16, %c0_17] : memref<64x1xf32, #tpu.memory_space<vmem>>, vector<64x1xf32>
    %22 = vector.broadcast %21 : vector<64x1xf32> to vector<64x256xf32>
    %23 = arith.addf %20, %22 : vector<64x256xf32>
    %cst_18 = arith.constant dense<0xFF800000> : vector<64xf32>
    %24 = vector.multi_reduction <maximumf>, %23, %cst_18 [1] : vector<64x256xf32> to vector<64xf32>
    %25 = vector.shape_cast %24 : vector<64xf32> to vector<64x1xf32>
    %c0_19 = arith.constant 0 : index
    %c0_20 = arith.constant 0 : index
    %c0_21 = arith.constant 0 : index
    %26 = vector.load %arg8[%c0_19, %c0_20, %c0_21] : memref<1x64x1xf32, #tpu.memory_space<vmem>>, vector<1x64x1xf32>
    %27 = vector.shape_cast %26 : vector<1x64x1xf32> to vector<64x1xf32>
    %28 = vector.shape_cast %25 : vector<64x1xf32> to vector<1x64x1xf32>
    tpu.vector_store %arg8[%c0_19, %c0_20, %c0_21], %28 {strides = array<i32>} : memref<1x64x1xf32, #tpu.memory_space<vmem>>, vector<1x64x1xf32>,
    return
  }
  func.func @transform_0(%arg0: i32) -> (i32, i32, i32) {
    %c0_i32 = arith.constant 0 : i32
    %c0_i32_0 = arith.constant 0 : i32
    %c0_i32_1 = arith.constant 0 : i32
    return %arg0, %c0_i32, %c0_i32_0 : i32, i32, i32
  }
  func.func @transform_1(%arg0: i32) -> (i32, i32) {
    %c0_i32 = arith.constant 0 : i32
    %c0_i32_0 = arith.constant 0 : i32
    %c0_i32_1 = arith.constant 0 : i32
    return %c0_i32, %c0_i32_0 : i32, i32
  }
  func.func @transform_2(%arg0: i32) -> (i32, i32) {
    %c0_i32 = arith.constant 0 : i32
    %c0_i32_0 = arith.constant 0 : i32
    %c0_i32_1 = arith.constant 0 : i32
    return %c0_i32, %c0_i32_0 : i32, i32
  }
  func.func @transform_3(%arg0: i32) -> (i32, i32) {
    %c0_i32 = arith.constant 0 : i32
    %c0_i32_0 = arith.constant 0 : i32
    %c0_i32_1 = arith.constant 0 : i32
    return %c0_i32, %c0_i32_0 : i32, i32
  }
  func.func @transform_4(%arg0: i32) -> (i32, i32) {
    %c0_i32 = arith.constant 0 : i32
    %c0_i32_0 = arith.constant 0 : i32
    %c0_i32_1 = arith.constant 0 : i32
    return %c0_i32, %c0_i32_0 : i32, i32
  }
  func.func @transform_5(%arg0: i32) -> (i32, i32) {
    %c0_i32 = arith.constant 0 : i32
    %c0_i32_0 = arith.constant 0 : i32
    %c0_i32_1 = arith.constant 0 : i32
    return %c0_i32, %c0_i32_0 : i32, i32
  }
  func.func @transform_6(%arg0: i32) -> (i32, i32) {
    %c0_i32 = arith.constant 0 : i32
    %c0_i32_0 = arith.constant 0 : i32
    %c0_i32_1 = arith.constant 0 : i32
    return %c0_i32, %c0_i32_0 : i32, i32
  }
  func.func @transform_7(%arg0: i32) -> (i32, i32, i32) {
    %c0_i32 = arith.constant 0 : i32
    %c0_i32_0 = arith.constant 0 : i32
    %c0_i32_1 = arith.constant 0 : i32
    return %arg0, %c0_i32, %c0_i32_0 : i32, i32, i32
  }
}

</mosaic_0001>

<llo_original>
// kernel: tpu_custom_call.1
$region0: #{tpu_custom_call.1}
  #allocation0 [shape = 'u32[]', space=smem, size = 0x4, offset = 0x4, fixed_abs, tag = 'smem constant byte address 0x4 - core index']
  #allocation1 [shape = 'u32[144,128]{1,0:T(1,128)}', space=vmem, size = 0x12000, scoped, tag = 'internal scratch']
  %s0 = inlined_call_operand.vmem [shape: f32[2,4,256], index: 0, kind: input, shape index: {}]
  %s1 = inlined_call_operand.vmem [shape: bf16[32,4], index: 1, kind: input, shape index: {}]
  %s2 = inlined_call_operand.vmem [shape: f32[32,1], index: 2, kind: input, shape index: {}]
  %s3 = inlined_call_operand.vmem [shape: bf16[64,32], index: 3, kind: input, shape index: {}]
  %s4 = inlined_call_operand.vmem [shape: f32[64,1], index: 4, kind: input, shape index: {}]
  %s5 = inlined_call_operand.vmem [shape: bf16[64,64], index: 5, kind: input, shape index: {}]
  %s6 = inlined_call_operand.vmem [shape: f32[64,1], index: 6, kind: input, shape index: {}]
  %s7 = inlined_call_operand.vmem [shape: f32[2,64,1], index: 7, kind: output, shape index: {}]
  %s8 = sld [smem:[#allocation0]]
  $region61: #{tpu_custom_call.1} parent=0
    _
  %s10 = ssub.s32 1, %s8
  %s11 = scalar_select 0, %s10, %s8
  loop: start=0, step=1, limit=4
  $region2: #{tpu_custom_call.1} parent=0 // loop_pre_header
    _
  $region3: #{tpu_custom_call.1} parent=0 // loop_header
    %s13 = sphi 0, %s17
    %p14 = scmp.ge.s32.totalorder %s13, 4
    %s23 = sphi 0, %s25
    %s26 = sphi 0, %s23
    %s27 = sphi 0, %s26
    %s43 = sphi 0, %s27
    %s47 = sphi 0, %s47
    %s49 = sphi 0, %s47
    %s50 = sphi 0, %s49
    %s64 = sphi 0, %s50
    %s68 = sphi 0, %s68
    %s70 = sphi 0, %s68
    %s71 = sphi 0, %s70
    %s85 = sphi 0, %s71
    %s89 = sphi 0, %s89
    %s91 = sphi 0, %s89
    %s92 = sphi 0, %s91
    %s106 = sphi 0, %s92
    %s110 = sphi 0, %s110
    %s112 = sphi 0, %s110
    %s113 = sphi 0, %s112
    %s127 = sphi 0, %s113
    %s131 = sphi 0, %s131
    %s133 = sphi 0, %s131
    %s134 = sphi 0, %s133
    %s148 = sphi 0, %s134
    %s152 = sphi 0, %s152
    %s154 = sphi 0, %s152
    %s155 = sphi 0, %s154
    %s169 = sphi 0, %s155
    %s175 = sphi 0, %s177
    %s178 = sphi 0, %s175
    %s179 = sphi 0, %s178
    %s195 = sphi 0, %s179
  $region4: #{tpu_custom_call.1} parent=0 // loop_header_branch
    %16 = sbr.rel (%p14) target = $region8
  $region5: #{tpu_custom_call.1} parent=0 // loop_body
    %s18 = ssub.s32 %s13, 1
    %s19 = ssub.s32 %s13, 2
    %s20 = sadd.s32 %s13, 1
    %s21 = ssub.s32 %s13, %s20
    %p22 = scmp.eq.s32.totalorder %s21, 0
    %s24 = sadd.s32 %s23, 1
    %s25 = scalar_select %p22, %s23, %s24
    %p28 = pneg %p22
    %p29 = scmp.eq.s32.totalorder %s13, 1
    %p30 = por %p28, %p29
    %p31 = scmp.ne.s32.totalorder %s23, %s26
    %p32 = scmp.eq.s32.totalorder %s13, 0
    %p33 = por %p31, %p32
    %p34 = scmp.ne.s32.totalorder %s23, %s26
    %p35 = scmp.eq.s32.totalorder %s18, 1
    %p36 = por %p34, %p35
    %p37 = scmp.ne.s32.totalorder %s26, %s27
    %p38 = scmp.eq.s32.totalorder %s18, 0
    %p39 = por %p37, %p38
    %p40 = scmp.ne.s32.totalorder %s26, %s27
    %p41 = scmp.eq.s32.totalorder %s19, 1
    %p42 = por %p40, %p41
    %p44 = scmp.ne.s32.totalorder %s27, %s43
    %p45 = scmp.eq.s32.totalorder %s19, 0
    %p46 = por %p44, %p45
    %s48 = sadd.s32 %s47, 1
    %p51 = scmp.eq.s32.totalorder %s13, 1
    %p52 = scmp.ne.s32.totalorder %s47, %s49
    %p53 = scmp.eq.s32.totalorder %s13, 0
    %p54 = por %p52, %p53
    %p55 = scmp.ne.s32.totalorder %s47, %s49
    %p56 = scmp.eq.s32.totalorder %s18, 1
    %p57 = por %p55, %p56
    %p58 = scmp.ne.s32.totalorder %s49, %s50
    %p59 = scmp.eq.s32.totalorder %s18, 0
    %p60 = por %p58, %p59
    %p61 = scmp.ne.s32.totalorder %s49, %s50
    %p62 = scmp.eq.s32.totalorder %s19, 1
    %p63 = por %p61, %p62
    %p65 = scmp.ne.s32.totalorder %s50, %s64
    %p66 = scmp.eq.s32.totalorder %s19, 0
    %p67 = por %p65, %p66
    %s69 = sadd.s32 %s68, 1
    %p72 = scmp.eq.s32.totalorder %s13, 1
    %p73 = scmp.ne.s32.totalorder %s68, %s70
    %p74 = scmp.eq.s32.totalorder %s13, 0
    %p75 = por %p73, %p74
    %p76 = scmp.ne.s32.totalorder %s68, %s70
    %p77 = scmp.eq.s32.totalorder %s18, 1
    %p78 = por %p76, %p77
    %p79 = scmp.ne.s32.totalorder %s70, %s71
    %p80 = scmp.eq.s32.totalorder %s18, 0
    %p81 = por %p79, %p80
    %p82 = scmp.ne.s32.totalorder %s70, %s71
    %p83 = scmp.eq.s32.totalorder %s19, 1
    %p84 = por %p82, %p83
    %p86 = scmp.ne.s32.totalorder %s71, %s85
    %p87 = scmp.eq.s32.totalorder %s19, 0
    %p88 = por %p86, %p87
    %s90 = sadd.s32 %s89, 1
    %p93 = scmp.eq.s32.totalorder %s13, 1
    %p94 = scmp.ne.s32.totalorder %s89, %s91
    %p95 = scmp.eq.s32.totalorder %s13, 0
    %p96 = por %p94, %p95
    %p97 = scmp.ne.s32.totalorder %s89, %s91
    %p98 = scmp.eq.s32.totalorder %s18, 1
    %p99 = por %p97, %p98
    %p100 = scmp.ne.s32.totalorder %s91, %s92
    %p101 = scmp.eq.s32.totalorder %s18, 0
    %p102 = por %p100, %p101
    %p103 = scmp.ne.s32.totalorder %s91, %s92
    %p104 = scmp.eq.s32.totalorder %s19, 1
    %p105 = por %p103, %p104
    %p107 = scmp.ne.s32.totalorder %s92, %s106
    %p108 = scmp.eq.s32.totalorder %s19, 0
    %p109 = por %p107, %p108
    %s111 = sadd.s32 %s110, 1
    %p114 = scmp.eq.s32.totalorder %s13, 1
    %p115 = scmp.ne.s32.totalorder %s110, %s112
    %p116 = scmp.eq.s32.totalorder %s13, 0
    %p117 = por %p115, %p116
    %p118 = scmp.ne.s32.totalorder %s110, %s112
    %p119 = scmp.eq.s32.totalorder %s18, 1
    %p120 = por %p118, %p119
    %p121 = scmp.ne.s32.totalorder %s112, %s113
    %p122 = scmp.eq.s32.totalorder %s18, 0
    %p123 = por %p121, %p122
    %p124 = scmp.ne.s32.totalorder %s112, %s113
    %p125 = scmp.eq.s32.totalorder %s19, 1
    %p126 = por %p124, %p125
    %p128 = scmp.ne.s32.totalorder %s113, %s127
    %p129 = scmp.eq.s32.totalorder %s19, 0
    %p130 = por %p128, %p129
    %s132 = sadd.s32 %s131, 1
    %p135 = scmp.eq.s32.totalorder %s13, 1
    %p136 = scmp.ne.s32.totalorder %s131, %s133
    %p137 = scmp.eq.s32.totalorder %s13, 0
    %p138 = por %p136, %p137
    %p139 = scmp.ne.s32.totalorder %s131, %s133
    %p140 = scmp.eq.s32.totalorder %s18, 1
    %p141 = por %p139, %p140
    %p142 = scmp.ne.s32.totalorder %s133, %s134
    %p143 = scmp.eq.s32.totalorder %s18, 0
    %p144 = por %p142, %p143
    %p145 = scmp.ne.s32.totalorder %s133, %s134
    %p146 = scmp.eq.s32.totalorder %s19, 1
    %p147 = por %p145, %p146
    %p149 = scmp.ne.s32.totalorder %s134, %s148
    %p150 = scmp.eq.s32.totalorder %s19, 0
    %p151 = por %p149, %p150
    %s153 = sadd.s32 %s152, 1
    %p156 = scmp.eq.s32.totalorder %s13, 1
    %p157 = scmp.ne.s32.totalorder %s152, %s154
    %p158 = scmp.eq.s32.totalorder %s13, 0
    %p159 = por %p157, %p158
    %p160 = scmp.ne.s32.totalorder %s152, %s154
    %p161 = scmp.eq.s32.totalorder %s18, 1
    %p162 = por %p160, %p161
    %p163 = scmp.ne.s32.totalorder %s154, %s155
    %p164 = scmp.eq.s32.totalorder %s18, 0
    %p165 = por %p163, %p164
    %p166 = scmp.ne.s32.totalorder %s154, %s155
    %p167 = scmp.eq.s32.totalorder %s19, 1
    %p168 = por %p166, %p167
    %p170 = scmp.ne.s32.totalorder %s155, %s169
    %p171 = scmp.eq.s32.totalorder %s19, 0
    %p172 = por %p170, %p171
    %s173 = ssub.s32 %s13, %s20
    %p174 = scmp.eq.s32.totalorder %s173, 0
    %s176 = sadd.s32 %s175, 1
    %s177 = scalar_select %p174, %s175, %s176
    %p180 = pneg %p174
    %p181 = scmp.eq.s32.totalorder %s13, 1
    %p182 = por %p180, %p181
    %p183 = scmp.ne.s32.totalorder %s175, %s178
    %p184 = scmp.eq.s32.totalorder %s13, 0
    %p185 = por %p183, %p184
    %p186 = scmp.ne.s32.totalorder %s175, %s178
    %p187 = scmp.eq.s32.totalorder %s18, 1
    %p188 = por %p186, %p187
    %p189 = scmp.ne.s32.totalorder %s178, %s179
    %p190 = scmp.eq.s32.totalorder %s18, 0
    %p191 = por %p189, %p190
    %p192 = scmp.ne.s32.totalorder %s178, %s179
    %p193 = scmp.eq.s32.totalorder %s19, 1
    %p194 = por %p192, %p193
    %p196 = scmp.ne.s32.totalorder %s179, %s195
    %p197 = scmp.eq.s32.totalorder %s19, 0
    %p198 = por %p196, %p197
    %p199 = scmp.le.s32.totalorder 1, %s13
    %p200 = scmp.lt.s32.totalorder %s13, 3
    %p201 = pnand %p199, %p200
    %p202 = pneg %p201
    // Predicated region
    $region9: #{tpu_custom_call.1} parent=5 // pred_check
      _
    $region10: #{tpu_custom_call.1} parent=5 // pred_check_branch
      %204 = sbr.rel (%p201) target = $region12
    $region11: #{tpu_custom_call.1} parent=5 // pred_region
      %s205 = ssub.s32 %s13, 1
      // Predicated region
      $region13: #{tpu_custom_call.1} parent=11 // pred_check
        %p206 = pneg %p60
      $region14: #{tpu_custom_call.1} parent=11 // pred_check_branch
        %208 = sbr.rel (%p206) target = $region16
      $region15: #{tpu_custom_call.1} parent=11 // pred_region
        _
      $region16: #{tpu_custom_call.1} parent=11 // pred_fallthru
        _
      // Predicated region
      $region17: #{tpu_custom_call.1} parent=11 // pred_check
        %p209 = pneg %p81
      $region18: #{tpu_custom_call.1} parent=11 // pred_check_branch
        %211 = sbr.rel (%p209) target = $region20
      $region19: #{tpu_custom_call.1} parent=11 // pred_region
        _
      $region20: #{tpu_custom_call.1} parent=11 // pred_fallthru
        _
      // Predicated region
      $region21: #{tpu_custom_call.1} parent=11 // pred_check
        %p212 = pneg %p102
      $region22: #{tpu_custom_call.1} parent=11 // pred_check_branch
        %214 = sbr.rel (%p212) target = $region24
      $region23: #{tpu_custom_call.1} parent=11 // pred_region
        _
      $region24: #{tpu_custom_call.1} parent=11 // pred_fallthru
        _
      // Predicated region
      $region25: #{tpu_custom_call.1} parent=11 // pred_check
        %p215 = pneg %p123
      $region26: #{tpu_custom_call.1} parent=11 // pred_check_branch
        %217 = sbr.rel (%p215) target = $region28
      $region27: #{tpu_custom_call.1} parent=11 // pred_region
        _
      $region28: #{tpu_custom_call.1} parent=11 // pred_fallthru
        _
      // Predicated region
      $region29: #{tpu_custom_call.1} parent=11 // pred_check
        %p218 = pneg %p144
      $region30: #{tpu_custom_call.1} parent=11 // pred_check_branch
        %220 = sbr.rel (%p218) target = $region32
      $region31: #{tpu_custom_call.1} parent=11 // pred_region
        _
      $region32: #{tpu_custom_call.1} parent=11 // pred_fallthru
        _
      // Predicated region
      $region33: #{tpu_custom_call.1} parent=11 // pred_check
        %p221 = pneg %p165
      $region34: #{tpu_custom_call.1} parent=11 // pred_check_branch
        %223 = sbr.rel (%p221) target = $region36
      $region35: #{tpu_custom_call.1} parent=11 // pred_region
        _
      $region36: #{tpu_custom_call.1} parent=11 // pred_fallthru
        _
    $region12: #{tpu_custom_call.1} parent=5 // pred_fallthru
      _
    %p224 = scmp.lt.s32.totalorder %s13, 2
    // Predicated region
    $region37: #{tpu_custom_call.1} parent=5 // pred_check
      %p225 = pneg %p224
    $region38: #{tpu_custom_call.1} parent=5 // pred_check_branch
      %227 = sbr.rel (%p225) target = $region40
    $region39: #{tpu_custom_call.1} parent=5 // pred_region
      // Predicated region
      $region41: #{tpu_custom_call.1} parent=39 // pred_check
        %p228 = pneg %p33
      $region42: #{tpu_custom_call.1} parent=39 // pred_check_branch
        %230 = sbr.rel (%p228) target = $region44
      $region43: #{tpu_custom_call.1} parent=39 // pred_region
        %p231 = scmp.lt.s32.totalorder %s13, 1
        %s232 = scalar_select %p231, %s13, 1
        %s233 = smul.addr %s232, 2
        %s234 = smul.addr %s233, 4
        %s235 = scalar_lea.vmem %s0, %s234
      $region44: #{tpu_custom_call.1} parent=39 // pred_fallthru
        _
    $region40: #{tpu_custom_call.1} parent=5 // pred_fallthru
      _
    %p236 = scmp.le.s32.totalorder 1, %s13
    %p237 = scmp.lt.s32.totalorder %s13, 3
    %p238 = pnand %p236, %p237
    %p239 = pneg %p238
    // Predicated region
    $region45: #{tpu_custom_call.1} parent=5 // pred_check
      _
    $region46: #{tpu_custom_call.1} parent=5 // pred_check_branch
      %241 = sbr.rel (%p238) target = $region48
    $region47: #{tpu_custom_call.1} parent=5 // pred_region
      %s242 = ssub.s32 %s13, 1
      %p243 = scmp.lt.s32.totalorder %s18, 1
      %s244 = scalar_select %p243, %s18, 1
      %s245 = smul.addr %s244, 2
      %s246 = smul.addr %s245, 4
      %s247 = scalar_lea.vmem %s0, %s246
      %p248 = pneg %p39
      %p249 = pneg %p36
      %p250 = pneg %p60
      %p251 = pneg %p57
      %p252 = pneg %p81
      %p253 = pneg %p78
      %p254 = pneg %p102
      %p255 = pneg %p99
      %p256 = pneg %p123
      %p257 = pneg %p120
      %p258 = pneg %p144
      %p259 = pneg %p141
      %p260 = pneg %p165
      %p261 = pneg %p162
      %p262 = pneg %p191
      %p263 = pneg %p188
      %p264 = scmp.lt.s32.totalorder %s18, 1
      %s265 = scalar_select %p264, %s18, 1
      %s266 = smul.addr %s265, 8
      %s267 = smul.addr %s266, 8
      %s268 = scalar_lea.vmem %s7, %s267
      %p269 = scmp.lt.s32.totalorder %s18, 1
      %s270 = scalar_select %p269, %s18, 1
      %s271 = smul.addr %s270, 2
      %s272 = smul.addr %s271, 4
      %s273 = scalar_lea.vmem %s0, %s272
      %p274 = scmp.lt.s32.totalorder %s18, 1
      %s275 = scalar_select %p274, %s18, 1
      %s276 = smul.addr %s275, 8
      %s277 = smul.addr %s276, 8
      %s278 = scalar_lea.vmem %s7, %s277
      %v280 = vld [vmem:[%s273] sm:$0xff]
      %v281 = vld [vmem:[%s1] sm:$0xf]
      %v282 = vld [vmem:[%s1 + $0x4] sm:$0xf]
      %v283 = vld [vmem:[%s1 + $0x8] sm:$0xf]
      %v284 = vld [vmem:[%s1 + $0xc] sm:$0xf]
      %v286 = vcombine.high %v280, %v280
      %v288 = vpack.c.bf16 %v280, %v280
      %v289 = vpack.c.bf16 %v286, %v286
      %v290 = vld [vmem:[%s2] sm:$0xff]
      %v291 = vld [vmem:[%s2 + $0x8] sm:$0xff]
      %v292 = vld [vmem:[%s2 + $0x10] sm:$0xff]
      %v293 = vld [vmem:[%s2 + $0x18] sm:$0xff]
      %295 = vset.pattern.permute.xlu0 0
      %296 = vperm.xlu0 %295, %v290
      %v297 = vpop.permute.xlu0 %296
      %300 = vset.pattern.permute.xlu0 0
      %301 = vperm.xlu0 %300, %v291
      %v302 = vpop.permute.xlu0 %301
      %305 = vset.pattern.permute.xlu0 0
      %306 = vperm.xlu0 %305, %v292
      %v307 = vpop.permute.xlu0 %306
      %310 = vset.pattern.permute.xlu0 0
      %311 = vperm.xlu0 %310, %v293
      %v312 = vpop.permute.xlu0 %311
      %v318 = vunpack.c.l.b16 %v281
      %v319 = vunpack.c.l.b16 %v282
      %v320 = vunpack.c.l.b16 %v283
      %v321 = vunpack.c.l.b16 %v284
      %v322 = vpack.c.b16 %v319, %v318
      %v323 = vpack.c.b16 %v321, %v320
      %vm324 = vcmask 31744
      %v326 = vsel %vm324, %v322, 0
      %v329 = vsel %vm324, %v323, 0
      %vm331 = vcmask 1041408
      %v333 = vsel %vm331, %v288, 0
      %v336 = vsel %vm331, %v289, 0
      %338 = vmatprep.subr.bf16.mxu0 %v336
      %339 = vmatpush1.bf16.msra.mxu0 %v333
      %340 = vmatprep.subr.bf16.mxu0 0
      %341 = vmatpush1.bf16.msra.mxu0 0
      %342 = vmatprep.subr.bf16.mxu0 0
      %343 = vmatpush1.bf16.msra.mxu0 0
      %344 = vmatprep.subr.bf16.mxu0 0
      %345 = vmatpush1.bf16.msra.mxu0 0
      %346 = vmatprep.subr.bf16.mxu0 0
      %347 = vmatpush1.bf16.msra.mxu0 0
      %348 = vmatprep.subr.bf16.mxu0 0
      %349 = vmatpush1.bf16.msra.mxu0 0
      %350 = vmatprep.subr.bf16.mxu0 0
      %351 = vmatpush1.bf16.msra.mxu0 0
      %352 = vmatprep.subr.bf16.mxu0 0
      %353 = vmatpush1.bf16.msra.mxu0 0
      %354 = vmatprep.subr.bf16.mxu0 0
      %355 = vmatpush1.bf16.msra.mxu0 0
      %356 = vmatprep.subr.bf16.mxu0 0
      %357 = vmatpush1.bf16.msra.mxu0 0
      %358 = vmatprep.subr.bf16.mxu0 0
      %359 = vmatpush1.bf16.msra.mxu0 0
      %360 = vmatprep.subr.bf16.mxu0 0
      %361 = vmatpush1.bf16.msra.mxu0 0
      %362 = vmatprep.subr.bf16.mxu0 0
      %363 = vmatpush1.bf16.msra.mxu0 0
      %364 = vmatprep.subr.bf16.mxu0 0
      %365 = vmatpush1.bf16.msra.mxu0 0
      %366 = vmatprep.subr.bf16.mxu0 0
      %367 = vmatpush1.bf16.msra.mxu0 0
      %368 = vmatprep.subr.bf16.mxu0 0
      %369 = vmatpush1.bf16.msra.mxu0 0
      %370 = vmatprep.mubr.bf16.mxu0 0
      %371 = vmatmul.mubr.bf16.gmra.mrb[0].mxu0 %v326
      %v372 = vpop.f32.mrb[0].mxu0
      %v373 = vadd.f32 %v297, %v372
      %v374 = vpop.f32.mrb[0].mxu0
      %v375 = vadd.f32 %v297, %v374
      %v376 = vpop.f32.mrb[0].mxu0
      %v377 = vadd.f32 %v302, %v376
      %v378 = vpop.f32.mrb[0].mxu0
      %v379 = vadd.f32 %v302, %v378
      %380 = vmatprep.mubr.bf16.mxu0 0
      %381 = vmatmul.mubr.bf16.gmra.mrb[0].mxu0 %v329
      %v382 = vpop.f32.mrb[0].mxu0
      %v383 = vadd.f32 %v307, %v382
      %v384 = vpop.f32.mrb[0].mxu0
      %v385 = vadd.f32 %v307, %v384
      %v386 = vpop.f32.mrb[0].mxu0
      %v387 = vadd.f32 %v312, %v386
      %v388 = vpop.f32.mrb[0].mxu0
      %v389 = vadd.f32 %v312, %v388
      %390 = vdwg.mxu0
      %v391 = vmax.f32 %v373, 0.0
      %v392 = vmax.f32 %v375, 0.0
      %v393 = vmax.f32 %v377, 0.0
      %v394 = vmax.f32 %v379, 0.0
      %v395 = vmax.f32 %v383, 0.0
      %v396 = vmax.f32 %v385, 0.0
      %v397 = vmax.f32 %v387, 0.0
      %v398 = vmax.f32 %v389, 0.0
      %v399 = vld [vmem:[%s3] sm:$0xf]
      %v400 = vld [vmem:[%s3 + $0x4] sm:$0xf]
      %v401 = vld [vmem:[%s3 + $0x8] sm:$0xf]
      %v402 = vld [vmem:[%s3 + $0xc] sm:$0xf]
      %v403 = vld [vmem:[%s3 + $0x10] sm:$0xf]
      %v404 = vld [vmem:[%s3 + $0x14] sm:$0xf]
      %v405 = vld [vmem:[%s3 + $0x18] sm:$0xf]
      %v406 = vld [vmem:[%s3 + $0x1c] sm:$0xf]
      %v407 = vpack.c.bf16 %v393, %v391
      %v408 = vpack.c.bf16 %v394, %v392
      %v409 = vpack.c.bf16 %v397, %v395
      %v410 = vpack.c.bf16 %v398, %v396
      %v411 = vld [vmem:[%s4] sm:$0xff]
      %v412 = vld [vmem:[%s4 + $0x8] sm:$0xff]
      %v413 = vld [vmem:[%s4 + $0x10] sm:$0xff]
      %v414 = vld [vmem:[%s4 + $0x18] sm:$0xff]
      %v415 = vld [vmem:[%s4 + $0x20] sm:$0xff]
      %v416 = vld [vmem:[%s4 + $0x28] sm:$0xff]
      %v417 = vld [vmem:[%s4 + $0x30] sm:$0xff]
      %v418 = vld [vmem:[%s4 + $0x38] sm:$0xff]
      %420 = vset.pattern.permute.xlu0 0
      %421 = vperm.xlu0 %420, %v411
      %v422 = vpop.permute.xlu0 %421
      %425 = vset.pattern.permute.xlu0 0
      %426 = vperm.xlu0 %425, %v412
      %v427 = vpop.permute.xlu0 %426
      %430 = vset.pattern.permute.xlu0 0
      %431 = vperm.xlu0 %430, %v413
      %v432 = vpop.permute.xlu0 %431
      %435 = vset.pattern.permute.xlu0 0
      %436 = vperm.xlu0 %435, %v414
      %v437 = vpop.permute.xlu0 %436
      %440 = vset.pattern.permute.xlu0 0
      %441 = vperm.xlu0 %440, %v415
      %v442 = vpop.permute.xlu0 %441
      %445 = vset.pattern.permute.xlu0 0
      %446 = vperm.xlu0 %445, %v416
      %v447 = vpop.permute.xlu0 %446
      %450 = vset.pattern.permute.xlu0 0
      %451 = vperm.xlu0 %450, %v417
      %v452 = vpop.permute.xlu0 %451
      %455 = vset.pattern.permute.xlu0 0
      %456 = vperm.xlu0 %455, %v418
      %v457 = vpop.permute.xlu0 %456
      %v467 = vunpack.c.l.b16 %v399
      %v468 = vunpack.c.l.b16 %v400
      %v469 = vunpack.c.l.b16 %v401
      %v470 = vunpack.c.l.b16 %v402
      %v471 = vunpack.c.l.b16 %v403
      %v472 = vunpack.c.l.b16 %v404
      %v473 = vunpack.c.l.b16 %v405
      %v474 = vunpack.c.l.b16 %v406
      %v475 = vpack.c.b16 %v468, %v467
      %v476 = vpack.c.b16 %v470, %v469
      %v477 = vpack.c.b16 %v472, %v471
      %v478 = vpack.c.b16 %v474, %v473
      %vm479 = vcmask 261120
      %v481 = vsel %vm479, %v475, 0
      %v484 = vsel %vm479, %v476, 0
      %v487 = vsel %vm479, %v477, 0
      %v490 = vsel %vm479, %v478, 0
      %492 = vmatprep.subr.bf16.mxu0 %v408
      %493 = vmatpush1.bf16.msra.mxu0 %v407
      %494 = vmatprep.subr.bf16.mxu0 %v410
      %495 = vmatpush1.bf16.msra.mxu0 %v409
      %496 = vmatprep.subr.bf16.mxu0 0
      %497 = vmatpush1.bf16.msra.mxu0 0
      %498 = vmatprep.subr.bf16.mxu0 0
      %499 = vmatpush1.bf16.msra.mxu0 0
      %500 = vmatprep.subr.bf16.mxu0 0
      %501 = vmatpush1.bf16.msra.mxu0 0
      %502 = vmatprep.subr.bf16.mxu0 0
      %503 = vmatpush1.bf16.msra.mxu0 0
      %504 = vmatprep.subr.bf16.mxu0 0
      %505 = vmatpush1.bf16.msra.mxu0 0
      %506 = vmatprep.subr.bf16.mxu0 0
      %507 = vmatpush1.bf16.msra.mxu0 0
      %508 = vmatprep.subr.bf16.mxu0 0
      %509 = vmatpush1.bf16.msra.mxu0 0
      %510 = vmatprep.subr.bf16.mxu0 0
      %511 = vmatpush1.bf16.msra.mxu0 0
      %512 = vmatprep.subr.bf16.mxu0 0
      %513 = vmatpush1.bf16.msra.mxu0 0
      %514 = vmatprep.subr.bf16.mxu0 0
      %515 = vmatpush1.bf16.msra.mxu0 0
      %516 = vmatprep.subr.bf16.mxu0 0
      %517 = vmatpush1.bf16.msra.mxu0 0
      %518 = vmatprep.subr.bf16.mxu0 0
      %519 = vmatpush1.bf16.msra.mxu0 0
      %520 = vmatprep.subr.bf16.mxu0 0
      %521 = vmatpush1.bf16.msra.mxu0 0
      %522 = vmatprep.subr.bf16.mxu0 0
      %523 = vmatpush1.bf16.msra.mxu0 0
      %524 = vmatprep.mubr.bf16.mxu0 0
      %525 = vmatmul.mubr.bf16.gmra.mrb[0].mxu0 %v481
      %v526 = vpop.f32.mrb[0].mxu0
      %v527 = vadd.f32 %v422, %v526
      %v528 = vpop.f32.mrb[0].mxu0
      %v529 = vadd.f32 %v422, %v528
      %v530 = vpop.f32.mrb[0].mxu0
      %v531 = vadd.f32 %v427, %v530
      %v532 = vpop.f32.mrb[0].mxu0
      %v533 = vadd.f32 %v427, %v532
      %534 = vmatprep.mubr.bf16.mxu0 0
      %535 = vmatmul.mubr.bf16.gmra.mrb[0].mxu0 %v484
      %v536 = vpop.f32.mrb[0].mxu0
      %v537 = vadd.f32 %v432, %v536
      %v538 = vpop.f32.mrb[0].mxu0
      %v539 = vadd.f32 %v432, %v538
      %v540 = vpop.f32.mrb[0].mxu0
      %v541 = vadd.f32 %v437, %v540
      %v542 = vpop.f32.mrb[0].mxu0
      %v543 = vadd.f32 %v437, %v542
      %544 = vmatprep.mubr.bf16.mxu0 0
      %545 = vmatmul.mubr.bf16.gmra.mrb[0].mxu0 %v487
      %v546 = vpop.f32.mrb[0].mxu0
      %v547 = vadd.f32 %v442, %v546
      %v548 = vpop.f32.mrb[0].mxu0
      %v549 = vadd.f32 %v442, %v548
      %v550 = vpop.f32.mrb[0].mxu0
      %v551 = vadd.f32 %v447, %v550
      %v552 = vpop.f32.mrb[0].mxu0
      %v553 = vadd.f32 %v447, %v552
      %554 = vmatprep.mubr.bf16.mxu0 0
      %555 = vmatmul.mubr.bf16.gmra.mrb[0].mxu0 %v490
      %v556 = vpop.f32.mrb[0].mxu0
      %v557 = vadd.f32 %v452, %v556
      %v558 = vpop.f32.mrb[0].mxu0
      %v559 = vadd.f32 %v452, %v558
      %v560 = vpop.f32.mrb[0].mxu0
      %v561 = vadd.f32 %v457, %v560
      %v562 = vpop.f32.mrb[0].mxu0
      %v563 = vadd.f32 %v457, %v562
      %564 = vdwg.mxu0
      %v565 = vmax.f32 %v527, 0.0
      %v566 = vmax.f32 %v529, 0.0
      %v567 = vmax.f32 %v531, 0.0
      %v568 = vmax.f32 %v533, 0.0
      %v569 = vmax.f32 %v537, 0.0
      %v570 = vmax.f32 %v539, 0.0
      %v571 = vmax.f32 %v541, 0.0
      %v572 = vmax.f32 %v543, 0.0
      %v573 = vmax.f32 %v547, 0.0
      %v574 = vmax.f32 %v549, 0.0
      %v575 = vmax.f32 %v551, 0.0
      %v576 = vmax.f32 %v553, 0.0
      %v577 = vmax.f32 %v557, 0.0
      %v578 = vmax.f32 %v559, 0.0
      %v579 = vmax.f32 %v561, 0.0
      %v580 = vmax.f32 %v563, 0.0
      %v581 = vld [vmem:[%s5] sm:$0xf]
      %v582 = vld [vmem:[%s5 + $0x4] sm:$0xf]
      %v583 = vld [vmem:[%s5 + $0x8] sm:$0xf]
      %v584 = vld [vmem:[%s5 + $0xc] sm:$0xf]
      %v585 = vld [vmem:[%s5 + $0x10] sm:$0xf]
      %v586 = vld [vmem:[%s5 + $0x14] sm:$0xf]
      %v587 = vld [vmem:[%s5 + $0x18] sm:$0xf]
      %v588 = vld [vmem:[%s5 + $0x1c] sm:$0xf]
      %v589 = vpack.c.bf16 %v567, %v565
      %v590 = vpack.c.bf16 %v568, %v566
      %v591 = vpack.c.bf16 %v571, %v569
      %v592 = vpack.c.bf16 %v572, %v570
      %v593 = vpack.c.bf16 %v575, %v573
      %v594 = vpack.c.bf16 %v576, %v574
      %v595 = vpack.c.bf16 %v579, %v577
      %v596 = vpack.c.bf16 %v580, %v578
      %v597 = vld [vmem:[%s6] sm:$0xff]
      %v598 = vld [vmem:[%s6 + $0x8] sm:$0xff]
      %v599 = vld [vmem:[%s6 + $0x10] sm:$0xff]
      %v600 = vld [vmem:[%s6 + $0x18] sm:$0xff]
      %v601 = vld [vmem:[%s6 + $0x20] sm:$0xff]
      %v602 = vld [vmem:[%s6 + $0x28] sm:$0xff]
      %v603 = vld [vmem:[%s6 + $0x30] sm:$0xff]
      %v604 = vld [vmem:[%s6 + $0x38] sm:$0xff]
      %606 = vset.pattern.permute.xlu0 0
      %607 = vperm.xlu0 %606, %v597
      %v608 = vpop.permute.xlu0 %607
      %611 = vset.pattern.permute.xlu0 0
      %612 = vperm.xlu0 %611, %v598
      %v613 = vpop.permute.xlu0 %612
      %616 = vset.pattern.permute.xlu0 0
      %617 = vperm.xlu0 %616, %v599
      %v618 = vpop.permute.xlu0 %617
      %621 = vset.pattern.permute.xlu0 0
      %622 = vperm.xlu0 %621, %v600
      %v623 = vpop.permute.xlu0 %622
      %626 = vset.pattern.permute.xlu0 0
      %627 = vperm.xlu0 %626, %v601
      %v628 = vpop.permute.xlu0 %627
      %631 = vset.pattern.permute.xlu0 0
      %632 = vperm.xlu0 %631, %v602
      %v633 = vpop.permute.xlu0 %632
      %636 = vset.pattern.permute.xlu0 0
      %637 = vperm.xlu0 %636, %v603
      %v638 = vpop.permute.xlu0 %637
      %641 = vset.pattern.permute.xlu0 0
      %642 = vperm.xlu0 %641, %v604
      %v643 = vpop.permute.xlu0 %642
      %v653 = vunpack.c.l.b16 %v581
      %v654 = vunpack.c.l.b16 %v582
      %v655 = vunpack.c.l.b16 %v583
      %v656 = vunpack.c.l.b16 %v584
      %v657 = vunpack.c.l.b16 %v585
      %v658 = vunpack.c.l.b16 %v586
      %v659 = vunpack.c.l.b16 %v587
      %v660 = vunpack.c.l.b16 %v588
      %v661 = vpack.c.b16 %v654, %v653
      %v662 = vpack.c.b16 %v656, %v655
      %v663 = vpack.c.b16 %v658, %v657
      %v664 = vpack.c.b16 %v660, %v659
      %vm665 = vcmask 523264
      %v667 = vsel %vm665, %v661, 0
      %v670 = vsel %vm665, %v662, 0
      %v673 = vsel %vm665, %v663, 0
      %v676 = vsel %vm665, %v664, 0
      %678 = vmatprep.subr.bf16.mxu0 %v590
      %679 = vmatpush1.bf16.msra.mxu0 %v589
      %680 = vmatprep.subr.bf16.mxu0 %v592
      %681 = vmatpush1.bf16.msra.mxu0 %v591
      %682 = vmatprep.subr.bf16.mxu0 %v594
      %683 = vmatpush1.bf16.msra.mxu0 %v593
      %684 = vmatprep.subr.bf16.mxu0 %v596
      %685 = vmatpush1.bf16.msra.mxu0 %v595
      %686 = vmatprep.subr.bf16.mxu0 0
      %687 = vmatpush1.bf16.msra.mxu0 0
      %688 = vmatprep.subr.bf16.mxu0 0
      %689 = vmatpush1.bf16.msra.mxu0 0
      %690 = vmatprep.subr.bf16.mxu0 0
      %691 = vmatpush1.bf16.msra.mxu0 0
      %692 = vmatprep.subr.bf16.mxu0 0
      %693 = vmatpush1.bf16.msra.mxu0 0
      %694 = vmatprep.subr.bf16.mxu0 0
      %695 = vmatpush1.bf16.msra.mxu0 0
      %696 = vmatprep.subr.bf16.mxu0 0
      %697 = vmatpush1.bf16.msra.mxu0 0
      %698 = vmatprep.subr.bf16.mxu0 0
      %699 = vmatpush1.bf16.msra.mxu0 0
      %700 = vmatprep.subr.bf16.mxu0 0
      %701 = vmatpush1.bf16.msra.mxu0 0
      %702 = vmatprep.subr.bf16.mxu0 0
      %703 = vmatpush1.bf16.msra.mxu0 0
      %704 = vmatprep.subr.bf16.mxu0 0
      %705 = vmatpush1.bf16.msra.mxu0 0
      %706 = vmatprep.subr.bf16.mxu0 0
      %707 = vmatpush1.bf16.msra.mxu0 0
      %708 = vmatprep.subr.bf16.mxu0 0
      %709 = vmatpush1.bf16.msra.mxu0 0
      %710 = vmatprep.mubr.bf16.mxu0 0
      %711 = vmatmul.mubr.bf16.gmra.mrb[0].mxu0 %v667
      %v712 = vpop.f32.mrb[0].mxu0
      %v713 = vadd.f32 %v608, %v712
      %v714 = vpop.f32.mrb[0].mxu0
      %v715 = vadd.f32 %v608, %v714
      %v716 = vpop.f32.mrb[0].mxu0
      %v717 = vadd.f32 %v613, %v716
      %v718 = vpop.f32.mrb[0].mxu0
      %v719 = vadd.f32 %v613, %v718
      %720 = vmatprep.mubr.bf16.mxu0 0
      %721 = vmatmul.mubr.bf16.gmra.mrb[0].mxu0 %v670
      %v722 = vpop.f32.mrb[0].mxu0
      %v723 = vadd.f32 %v618, %v722
      %v724 = vpop.f32.mrb[0].mxu0
      %v725 = vadd.f32 %v618, %v724
      %v726 = vpop.f32.mrb[0].mxu0
      %v727 = vadd.f32 %v623, %v726
      %v728 = vpop.f32.mrb[0].mxu0
      %v729 = vadd.f32 %v623, %v728
      %730 = vmatprep.mubr.bf16.mxu0 0
      %731 = vmatmul.mubr.bf16.gmra.mrb[0].mxu0 %v673
      %v732 = vpop.f32.mrb[0].mxu0
      %v733 = vadd.f32 %v628, %v732
      %v734 = vpop.f32.mrb[0].mxu0
      %v735 = vadd.f32 %v628, %v734
      %v736 = vpop.f32.mrb[0].mxu0
      %v737 = vadd.f32 %v633, %v736
      %v738 = vpop.f32.mrb[0].mxu0
      %v739 = vadd.f32 %v633, %v738
      %740 = vmatprep.mubr.bf16.mxu0 0
      %741 = vmatmul.mubr.bf16.gmra.mrb[0].mxu0 %v676
      %v742 = vpop.f32.mrb[0].mxu0
      %v743 = vadd.f32 %v638, %v742
      %v744 = vpop.f32.mrb[0].mxu0
      %v745 = vadd.f32 %v638, %v744
      %v746 = vpop.f32.mrb[0].mxu0
      %v747 = vadd.f32 %v643, %v746
      %v748 = vpop.f32.mrb[0].mxu0
      %v749 = vadd.f32 %v643, %v748
      %750 = vdwg.mxu0
      %v751 = vmax.f32 %v713, %v715
      %752 = vmax.xlane.f32.xlu0 %v751
      %v753 = vpop.xlane.xlu0 %752
      %v754 = vmax.f32 %v717, %v719
      %755 = vmax.xlane.f32.xlu0 %v754
      %v756 = vpop.xlane.xlu0 %755
      %v757 = vmax.f32 %v723, %v725
      %758 = vmax.xlane.f32.xlu0 %v757
      %v759 = vpop.xlane.xlu0 %758
      %v760 = vmax.f32 %v727, %v729
      %761 = vmax.xlane.f32.xlu0 %v760
      %v762 = vpop.xlane.xlu0 %761
      %v763 = vmax.f32 %v733, %v735
      %764 = vmax.xlane.f32.xlu0 %v763
      %v765 = vpop.xlane.xlu0 %764
      %v766 = vmax.f32 %v737, %v739
      %767 = vmax.xlane.f32.xlu0 %v766
      %v768 = vpop.xlane.xlu0 %767
      %v769 = vmax.f32 %v743, %v745
      %770 = vmax.xlane.f32.xlu0 %v769
      %v771 = vpop.xlane.xlu0 %770
      %v772 = vmax.f32 %v747, %v749
      %773 = vmax.xlane.f32.xlu0 %v772
      %v774 = vpop.xlane.xlu0 %773
      %vm775 = vcmask 7168
      %776 = vst.msk [vmem:[%s278] sm:$0xff] %vm775, %v753
      %777 = vst.msk [vmem:[%s278 + $0x8] sm:$0xff] %vm775, %v756
      %778 = vst.msk [vmem:[%s278 + $0x10] sm:$0xff] %vm775, %v759
      %779 = vst.msk [vmem:[%s278 + $0x18] sm:$0xff] %vm775, %v762
      %780 = vst.msk [vmem:[%s278 + $0x20] sm:$0xff] %vm775, %v765
      %781 = vst.msk [vmem:[%s278 + $0x28] sm:$0xff] %vm775, %v768
      %782 = vst.msk [vmem:[%s278 + $0x30] sm:$0xff] %vm775, %v771
      %783 = vst.msk [vmem:[%s278 + $0x38] sm:$0xff] %vm775, %v774
      %p784 = scmp.lt.s32.totalorder %s18, 1
      %s785 = scalar_select %p784, %s18, 1
      %s786 = smul.addr %s785, 8
      %s787 = smul.addr %s786, 8
      %s788 = scalar_lea.vmem %s7, %s787
      // Predicated region
      $region49: #{tpu_custom_call.1} parent=47 // pred_check
        %p789 = pneg %p188
      $region50: #{tpu_custom_call.1} parent=47 // pred_check_branch
        %791 = sbr.rel (%p789) target = $region52
      $region51: #{tpu_custom_call.1} parent=47 // pred_region
        _
      $region52: #{tpu_custom_call.1} parent=47 // pred_fallthru
        _
    $region48: #{tpu_custom_call.1} parent=5 // pred_fallthru
      _
    %p792 = scmp.le.s32.totalorder 2, %s13
    // Predicated region
    $region53: #{tpu_custom_call.1} parent=5 // pred_check
      %p793 = pneg %p792
    $region54: #{tpu_custom_call.1} parent=5 // pred_check_branch
      %795 = sbr.rel (%p793) target = $region56
    $region55: #{tpu_custom_call.1} parent=5 // pred_region
      %s796 = ssub.s32 %s13, 2
      // Predicated region
      $region57: #{tpu_custom_call.1} parent=55 // pred_check
        %p797 = pneg %p194
      $region58: #{tpu_custom_call.1} parent=55 // pred_check_branch
        %799 = sbr.rel (%p797) target = $region60
      $region59: #{tpu_custom_call.1} parent=55 // pred_region
        %p800 = scmp.lt.s32.totalorder %s19, 1
        %s801 = scalar_select %p800, %s19, 1
        %s802 = smul.addr %s801, 8
        %s803 = smul.addr %s802, 8
        %s804 = scalar_lea.vmem %s7, %s803
      $region60: #{tpu_custom_call.1} parent=55 // pred_fallthru
        _
    $region56: #{tpu_custom_call.1} parent=5 // pred_fallthru
      _
  $region6: #{tpu_custom_call.1} parent=0 // loop_footer
    %s17 = sadd.s32 1, %s13
  $region7: #{tpu_custom_call.1} parent=0 // loop_footer_branch
    %12 = sbr.rel target = $region3
  $region8: #{tpu_custom_call.1} parent=0 // loop_exit
    _

</llo_original>
